<compile_context>
chip_gen: v7x
topology: tpu7x:2x2x1
jax: 0.10.0
libtpu: 0.0.40
codegen_flags: <defaults>
</compile_context>

<pallas_src>
import jax
import jax.numpy as jnp
from jax.experimental import pallas as pl
from jax.experimental.pallas import tpu as pltpu


def _round_up(n, m):
    return ((n + m - 1) // m) * m


def _default_tile_b():
    # 128 saturates v5e's 4x(128x128) MXU; 256 matches v6e/v7x's 256x256 MXU.
    try:
        kind = jax.devices()[0].device_kind.lower()
    except Exception:
        kind = ""
    if "v4" in kind or "v5" in kind:
        return 128
    return 256


def mlp_decoder_kernel(x_ref, w1_ref, b1_ref, w2_ref, b2_ref, w3_ref, b3_ref, o_ref):
    # Layer 1: bf16 operands on the MXU, f32 accumulate, f32 bias + ReLU epilogue.
    h = jnp.dot(x_ref[...], w1_ref[...], preferred_element_type=jnp.float32)
    h = jnp.maximum(h + b1_ref[...], 0.0)
    # Layer 2
    h = jnp.dot(h.astype(w2_ref.dtype), w2_ref[...], preferred_element_type=jnp.float32)
    h = jnp.maximum(h + b2_ref[...], 0.0)
    # Layer 3 (no output activation: output_activation=None in the PyTorch module)
    o = jnp.dot(h.astype(w3_ref.dtype), w3_ref[...], preferred_element_type=jnp.float32)
    o_ref[...] = (o + b3_ref[...]).astype(o_ref.dtype)


def mlp_decoder(x, params, *, tile_b=None, compute_dtype=jnp.bfloat16):
    """x: (B, input_dim) float32. params: dict of w1,b1,w2,b2,w3,b3 (weights (in,out))."""
    B, in_dim = x.shape
    w1, b1 = params["w1"], params["b1"]
    w2, b2 = params["w2"], params["b2"]
    w3, b3 = params["w3"], params["b3"]
    h1 = w1.shape[1]
    h2 = w2.shape[1]
    out_dim = w3.shape[1]

    if tile_b is None:
        tile_b = _default_tile_b()

    # --- wrapper-side layout prep -------------------------------------------
    # bf16 operands (MXU-native on all generations, halves weight DMA bytes).
    x_c = x.astype(compute_dtype)
    w1_c = w1.astype(compute_dtype)
    w2_c = w2.astype(compute_dtype)

    # Lane-dense writeback: pad final output features up to a multiple of 128 so
    # stores are full-lane (no vst.msk / strided HBM writes). Sliced off below.
    out_pad = _round_up(out_dim, 128)
    w3_c = jnp.zeros((h2, out_pad), compute_dtype).at[:, :out_dim].set(w3.astype(compute_dtype))
    b3_p = jnp.zeros((1, out_pad), jnp.float32).at[:, :out_dim].set(b3.astype(jnp.float32))
    b1_f = b1.astype(jnp.float32)
    b2_f = b2.astype(jnp.float32)

    # Pad batch up to a multiple of tile_b (no hard assert on divisibility).
    B_pad = _round_up(B, tile_b)
    if B_pad != B:
        x_c = jnp.pad(x_c, ((0, B_pad - B), (0, 0)))

    grid = (B_pad // tile_b,)

    # Grid-invariant (VMEM-resident) blocks for weights and biases.
    resident = lambda shape: pl.BlockSpec(shape, lambda i: (0, 0))

    flops = 2 * B_pad * (in_dim * h1 + h1 * h2 + h2 * out_pad)
    bytes_accessed = (
        x_c.size * x_c.dtype.itemsize
        + (w1_c.size + w2_c.size + w3_c.size) * 2      # bf16 weights
        + (h1 + h2 + out_pad) * 4                      # f32 biases
        + B_pad * out_pad * 4                          # f32 output
    )

    out_padded = pl.pallas_call(
        mlp_decoder_kernel,
        out_shape=jax.ShapeDtypeStruct((B_pad, out_pad), x.dtype),
        grid_spec=pltpu.PrefetchScalarGridSpec(
            num_scalar_prefetch=0,
            grid=grid,
            in_specs=[
                pl.BlockSpec((tile_b, in_dim), lambda i: (i, 0)),  # x tile (pipelined)
                resident((in_dim, h1)),                            # w1
                resident((1, h1)),                                 # b1
                resident((h1, h2)),                                # w2
                resident((1, h2)),                                 # b2
                resident((h2, out_pad)),                           # w3 (lane-padded)
                resident((1, out_pad)),                            # b3 (lane-padded)
            ],
            out_specs=pl.BlockSpec((tile_b, out_pad), lambda i: (i, 0)),
        ),
        compiler_params=pltpu.CompilerParams(
            dimension_semantics=("parallel",),    # batch tiles shard across v7x's 2 TCs
            vmem_limit_bytes=32 * 1024 * 1024,    # fits every generation incl. v7x (64 MiB)
        ),
        cost_estimate=pl.CostEstimate(
            flops=flops, transcendentals=0, bytes_accessed=bytes_accessed),
    )(x_c, w1_c, b1_f, w2_c, b2_f, w3_c, b3_p)

    return out_padded[:B, :out_dim]


def init_params(key, input_dim, output_dim, hidden_dims=(256, 256)):
    """Deterministic synthetic init (PyTorch-like uniform bounds), weights as (in, out)."""
    dims = [input_dim, *hidden_dims, output_dim]
    params = {}
    keys = jax.random.split(key, 2 * (len(dims) - 1))
    for i in range(len(dims) - 1):
        fan_in, fan_out = dims[i], dims[i + 1]
        bound = 1.0 / jnp.sqrt(fan_in)
        w = jax.random.uniform(keys[2 * i], (fan_in, fan_out),
                               minval=-bound, maxval=bound, dtype=jnp.float32)
        b = jax.random.uniform(keys[2 * i + 1], (1, fan_out),
                               minval=-bound, maxval=bound, dtype=jnp.float32)
        params[f"w{i + 1}"] = w
        params[f"b{i + 1}"] = b
    return params


def mlp_decoder_ref(x, params, compute_dtype=jnp.bfloat16):
    """Pure-JAX reference mirroring the kernel numerics (bf16 operands, f32 accumulate)."""
    cd = compute_dtype
    h = jnp.dot(x.astype(cd), params["w1"].astype(cd),
                preferred_element_type=jnp.float32) + params["b1"]
    h = jnp.maximum(h, 0.0)
    h = jnp.dot(h.astype(cd), params["w2"].astype(cd),
                preferred_element_type=jnp.float32) + params["b2"]
    h = jnp.maximum(h, 0.0)
    return jnp.dot(h.astype(cd), params["w3"].astype(cd),
                   preferred_element_type=jnp.float32) + params["b3"]


if __name__ == "__main__":
    key = jax.random.PRNGKey(0)
    k_x, k_p = jax.random.split(key)

    B = 8            # batch
    input_dim = 32   # latent / input feature dim
    output_dim = 16  # action dim
    hidden_dims = (256, 256)

    x = jax.random.normal(k_x, (B, input_dim), dtype=jnp.float32)
    params = init_params(k_p, input_dim, output_dim, hidden_dims)

    out = mlp_decoder(x, params)
    out = jax.block_until_ready(out)

    ref = mlp_decoder_ref(x, params)
    assert out.shape == (B, output_dim), out.shape
    assert jnp.allclose(out, ref, atol=2e-2, rtol=2e-2), "mismatch vs reference"

    print("KERNEL_OK")
</pallas_src>

<mosaic_0001>
module attributes {stable_mosaic.version = 11 : i64} {
  func.func @mlp_decoder_kernel(%arg0: i32, %arg1: memref<256x32xbf16, #tpu.memory_space<vmem>>, %arg2: memref<32x256xbf16, #tpu.memory_space<vmem>>, %arg3: memref<1x256xf32, #tpu.memory_space<vmem>>, %arg4: memref<256x256xbf16, #tpu.memory_space<vmem>>, %arg5: memref<1x256xf32, #tpu.memory_space<vmem>>, %arg6: memref<256x128xbf16, #tpu.memory_space<vmem>>, %arg7: memref<1x128xf32, #tpu.memory_space<vmem>>, %arg8: memref<256x128xf32, #tpu.memory_space<vmem>>) attributes {dimension_semantics = [#tpu.dimension_semantics<parallel>], iteration_bounds = array<i64: 1>, scalar_prefetch = 0 : i64, scratch_operands = 0 : i64, tpu.core_type = #tpu.core_type<tc>, window_params = [{transform_indices = @transform_0, window_bounds = array<i64: 256, 32>}, {pipeline_mode = #tpu.pipeline_mode<synchronous>, transform_indices = @transform_1, window_bounds = array<i64: 32, 256>}, {pipeline_mode = #tpu.pipeline_mode<synchronous>, transform_indices = @transform_2, window_bounds = array<i64: 1, 256>}, {pipeline_mode = #tpu.pipeline_mode<synchronous>, transform_indices = @transform_3, window_bounds = array<i64: 256, 256>}, {pipeline_mode = #tpu.pipeline_mode<synchronous>, transform_indices = @transform_4, window_bounds = array<i64: 1, 256>}, {pipeline_mode = #tpu.pipeline_mode<synchronous>, transform_indices = @transform_5, window_bounds = array<i64: 256, 128>}, {pipeline_mode = #tpu.pipeline_mode<synchronous>, transform_indices = @transform_6, window_bounds = array<i64: 1, 128>}, {transform_indices = @transform_7, window_bounds = array<i64: 256, 128>}]} {
    %c0 = arith.constant 0 : index
    %c0_0 = arith.constant 0 : index
    %0 = vector.load %arg1[%c0, %c0_0] : memref<256x32xbf16, #tpu.memory_space<vmem>>, vector<256x32xbf16>
    %c0_1 = arith.constant 0 : index
    %c0_2 = arith.constant 0 : index
    %1 = vector.load %arg2[%c0_1, %c0_2] : memref<32x256xbf16, #tpu.memory_space<vmem>>, vector<32x256xbf16>
    %cst = arith.constant dense<0.000000e+00> : vector<256x256xf32>
    %2 = tpu.matmul %0, %1, %cst {dimension_numbers = #tpu.dot_dimension_numbers<[1], [0], [0], [1], [0, 0, 1, 1], [], []>} : vector<256x32xbf16>, vector<32x256xbf16>, vector<256x256xf32> -> vector<256x256xf32>
    %c0_3 = arith.constant 0 : index
    %c0_4 = arith.constant 0 : index
    %3 = vector.load %arg3[%c0_3, %c0_4] : memref<1x256xf32, #tpu.memory_space<vmem>>, vector<1x256xf32>
    %4 = vector.broadcast %3 : vector<1x256xf32> to vector<256x256xf32>
    %5 = arith.addf %2, %4 : vector<256x256xf32>
    %cst_5 = arith.constant 0.000000e+00 : f32
    %6 = vector.broadcast %cst_5 : f32 to vector<256x256xf32>
    %7 = arith.maximumf %5, %6 : vector<256x256xf32>
    %8 = arith.truncf %7 : vector<256x256xf32> to vector<256x256xbf16>
    %c0_6 = arith.constant 0 : index
    %c0_7 = arith.constant 0 : index
    %9 = vector.load %arg4[%c0_6, %c0_7] : memref<256x256xbf16, #tpu.memory_space<vmem>>, vector<256x256xbf16>
    %cst_8 = arith.constant dense<0.000000e+00> : vector<256x256xf32>
    %10 = tpu.matmul %8, %9, %cst_8 {dimension_numbers = #tpu.dot_dimension_numbers<[1], [0], [0], [1], [0, 0, 1, 1], [], []>} : vector<256x256xbf16>, vector<256x256xbf16>, vector<256x256xf32> -> vector<256x256xf32>
    %c0_9 = arith.constant 0 : index
    %c0_10 = arith.constant 0 : index
    %11 = vector.load %arg5[%c0_9, %c0_10] : memref<1x256xf32, #tpu.memory_space<vmem>>, vector<1x256xf32>
    %12 = vector.broadcast %11 : vector<1x256xf32> to vector<256x256xf32>
    %13 = arith.addf %10, %12 : vector<256x256xf32>
    %cst_11 = arith.constant 0.000000e+00 : f32
    %14 = vector.broadcast %cst_11 : f32 to vector<256x256xf32>
    %15 = arith.maximumf %13, %14 : vector<256x256xf32>
    %16 = arith.truncf %15 : vector<256x256xf32> to vector<256x256xbf16>
    %c0_12 = arith.constant 0 : index
    %c0_13 = arith.constant 0 : index
    %17 = vector.load %arg6[%c0_12, %c0_13] : memref<256x128xbf16, #tpu.memory_space<vmem>>, vector<256x128xbf16>
    %cst_14 = arith.constant dense<0.000000e+00> : vector<256x128xf32>
    %18 = tpu.matmul %16, %17, %cst_14 {dimension_numbers = #tpu.dot_dimension_numbers<[1], [0], [0], [1], [0, 0, 1, 1], [], []>} : vector<256x256xbf16>, vector<256x128xbf16>, vector<256x128xf32> -> vector<256x128xf32>
    %c0_15 = arith.constant 0 : index
    %c0_16 = arith.constant 0 : index
    %19 = vector.load %arg7[%c0_15, %c0_16] : memref<1x128xf32, #tpu.memory_space<vmem>>, vector<1x128xf32>
    %20 = vector.broadcast %19 : vector<1x128xf32> to vector<256x128xf32>
    %21 = arith.addf %18, %20 : vector<256x128xf32>
    %c0_17 = arith.constant 0 : index
    %c0_18 = arith.constant 0 : index
    %22 = vector.load %arg8[%c0_17, %c0_18] : memref<256x128xf32, #tpu.memory_space<vmem>>, vector<256x128xf32>
    tpu.vector_store %arg8[%c0_17, %c0_18], %21 {strides = array<i32>} : memref<256x128xf32, #tpu.memory_space<vmem>>, vector<256x128xf32>,
    return
  }
  func.func @transform_0(%arg0: i32) -> (i32, i32) {
    %c0_i32 = arith.constant 0 : i32
    %c0_i32_0 = arith.constant 0 : i32
    return %arg0, %c0_i32 : i32, i32
  }
  func.func @transform_1(%arg0: i32) -> (i32, i32) {
    %c0_i32 = arith.constant 0 : i32
    %c0_i32_0 = arith.constant 0 : i32
    %c0_i32_1 = arith.constant 0 : i32
    return %c0_i32, %c0_i32_0 : i32, i32
  }
  func.func @transform_2(%arg0: i32) -> (i32, i32) {
    %c0_i32 = arith.constant 0 : i32
    %c0_i32_0 = arith.constant 0 : i32
    %c0_i32_1 = arith.constant 0 : i32
    return %c0_i32, %c0_i32_0 : i32, i32
  }
  func.func @transform_3(%arg0: i32) -> (i32, i32) {
    %c0_i32 = arith.constant 0 : i32
    %c0_i32_0 = arith.constant 0 : i32
    %c0_i32_1 = arith.constant 0 : i32
    return %c0_i32, %c0_i32_0 : i32, i32
  }
  func.func @transform_4(%arg0: i32) -> (i32, i32) {
    %c0_i32 = arith.constant 0 : i32
    %c0_i32_0 = arith.constant 0 : i32
    %c0_i32_1 = arith.constant 0 : i32
    return %c0_i32, %c0_i32_0 : i32, i32
  }
  func.func @transform_5(%arg0: i32) -> (i32, i32) {
    %c0_i32 = arith.constant 0 : i32
    %c0_i32_0 = arith.constant 0 : i32
    %c0_i32_1 = arith.constant 0 : i32
    return %c0_i32, %c0_i32_0 : i32, i32
  }
  func.func @transform_6(%arg0: i32) -> (i32, i32) {
    %c0_i32 = arith.constant 0 : i32
    %c0_i32_0 = arith.constant 0 : i32
    %c0_i32_1 = arith.constant 0 : i32
    return %c0_i32, %c0_i32_0 : i32, i32
  }
  func.func @transform_7(%arg0: i32) -> (i32, i32) {
    %c0_i32 = arith.constant 0 : i32
    %c0_i32_0 = arith.constant 0 : i32
    return %arg0, %c0_i32 : i32, i32
  }
}

</mosaic_0001>

<llo_original>
// kernel: tpu_custom_call.1
$region0: #{tpu_custom_call.1}
  #allocation0 [shape = 'u32[]', space=smem, size = 0x4, offset = 0x4, fixed_abs, tag = 'smem constant byte address 0x4 - core index']
  #allocation1 [shape = 'u32[144,128]{1,0:T(1,128)}', space=vmem, size = 0x12000, scoped, tag = 'internal scratch']
  %s0 = inlined_call_operand.vmem [shape: bf16[256,32], index: 0, kind: input, shape index: {}]
  %s1 = inlined_call_operand.vmem [shape: bf16[32,256], index: 1, kind: input, shape index: {}]
  %s2 = inlined_call_operand.vmem [shape: f32[1,256], index: 2, kind: input, shape index: {}]
  %s3 = inlined_call_operand.hbm [shape: bf16[256,256], index: 3, kind: input, shape index: {}]
  %s4 = inlined_call_operand.vmem [shape: f32[1,256], index: 4, kind: input, shape index: {}]
  %s5 = inlined_call_operand.vmem [shape: bf16[256,128], index: 5, kind: input, shape index: {}]
  %s6 = inlined_call_operand.vmem [shape: f32[1,128], index: 6, kind: input, shape index: {}]
  %s7 = inlined_call_operand.hbm [shape: f32[256,128], index: 7, kind: output, shape index: {}]
  %s8 = sld [smem:[#allocation0]]
  $region42: #{tpu_custom_call.1} parent=0
    _
  %s10 = ssub.s32 1, %s8
  %s11 = scalar_select 0, %s10, %s8
  $region1: #{tpu_custom_call.1} parent=0
    #allocation2 [shape = 'u8[131072]{0}', space=vmem, size = 0x20000, scoped, tag = 'input window, operand 3, single buffered']
    #allocation3 [shape = 's32[1]{0}', space=sflag, size = 0x4, scoped, tag = 'scoped memory for tpu_custom_call.1']
    #allocation4 [shape = 's32[1]{0}', space=sflag, size = 0x4, scoped, tag = 'scoped memory for tpu_custom_call.1']
    #allocation5 [shape = 'u8[131072]{0}', space=vmem, size = 0x20000, scoped, tag = 'output window, operand 0, single buffered']
    %12 = vsyncpa [#allocation3], 0
    %13 = vsyncpa [#allocation4], 0
    // Predicated region
    $region2: #{tpu_custom_call.1} parent=1 // pred_check
      _
    $region3: #{tpu_custom_call.1} parent=1 // pred_check_branch
      %15 = sbr.rel (0) target = $region5
    $region4: #{tpu_custom_call.1} parent=1 // pred_region
      _
    $region5: #{tpu_custom_call.1} parent=1 // pred_fallthru
      _
    // Predicated region
    $region6: #{tpu_custom_call.1} parent=1 // pred_check
      _
    $region7: #{tpu_custom_call.1} parent=1 // pred_check_branch
      %17 = sbr.rel (0) target = $region9
    $region8: #{tpu_custom_call.1} parent=1 // pred_region
      _
    $region9: #{tpu_custom_call.1} parent=1 // pred_fallthru
      _
    // Predicated region
    $region10: #{tpu_custom_call.1} parent=1 // pred_check
      _
    $region11: #{tpu_custom_call.1} parent=1 // pred_check_branch
      %19 = sbr.rel (0) target = $region13
    $region12: #{tpu_custom_call.1} parent=1 // pred_region
      _
    $region13: #{tpu_custom_call.1} parent=1 // pred_fallthru
      _
    // Predicated region
    $region14: #{tpu_custom_call.1} parent=1 // pred_check
      _
    $region15: #{tpu_custom_call.1} parent=1 // pred_check_branch
      %21 = sbr.rel (0) target = $region17
    $region16: #{tpu_custom_call.1} parent=1 // pred_region
      %s23 = ssub.s32 4096, 4096
      %24 = vsyncadd [#allocation3], %s23
      %s25 = sshll.u32 [#allocation2], 4
      %s26 = int_to_ptr.vmem [resolvable:$true] %s25
      %31 = dma.hbm_to_vmem [thread:$0]  %s3, 4096, %s26, [#allocation3], 128, 128, 8
    $region17: #{tpu_custom_call.1} parent=1 // pred_fallthru
      _
    // Predicated region
    $region18: #{tpu_custom_call.1} parent=1 // pred_check
      _
    $region19: #{tpu_custom_call.1} parent=1 // pred_check_branch
      %33 = sbr.rel (0) target = $region21
    $region20: #{tpu_custom_call.1} parent=1 // pred_region
      _
    $region21: #{tpu_custom_call.1} parent=1 // pred_fallthru
      _
    // Predicated region
    $region22: #{tpu_custom_call.1} parent=1 // pred_check
      _
    $region23: #{tpu_custom_call.1} parent=1 // pred_check_branch
      %35 = sbr.rel (0) target = $region25
    $region24: #{tpu_custom_call.1} parent=1 // pred_region
      _
    $region25: #{tpu_custom_call.1} parent=1 // pred_fallthru
      _
    // Predicated region
    $region26: #{tpu_custom_call.1} parent=1 // pred_check
      _
    $region27: #{tpu_custom_call.1} parent=1 // pred_check_branch
      %37 = sbr.rel (0) target = $region29
    $region28: #{tpu_custom_call.1} parent=1 // pred_region
      _
    $region29: #{tpu_custom_call.1} parent=1 // pred_fallthru
      _
    // Predicated region
    $region30: #{tpu_custom_call.1} parent=1 // pred_check
      _
    $region31: #{tpu_custom_call.1} parent=1 // pred_check_branch
      %39 = sbr.rel (0) target = $region33
    $region32: #{tpu_custom_call.1} parent=1 // pred_region
      %40 = dma.done [#allocation3], 4096
    $region33: #{tpu_custom_call.1} parent=1 // pred_fallthru
      _
    %v42 = vld [vmem:[%s0] sm:$0xf]
    %v43 = vld [vmem:[%s0 + $0x4] sm:$0xf]
    %v44 = vld [vmem:[%s0 + $0x8] sm:$0xf]
    %v45 = vld [vmem:[%s0 + $0xc] sm:$0xf]
    %v46 = vld [vmem:[%s0 + $0x10] sm:$0xf]
    %v47 = vld [vmem:[%s0 + $0x14] sm:$0xf]
    %v48 = vld [vmem:[%s0 + $0x18] sm:$0xf]
    %v49 = vld [vmem:[%s0 + $0x1c] sm:$0xf]
    %v50 = vld [vmem:[%s0 + $0x20] sm:$0xf]
    %v51 = vld [vmem:[%s0 + $0x24] sm:$0xf]
    %v52 = vld [vmem:[%s0 + $0x28] sm:$0xf]
    %v53 = vld [vmem:[%s0 + $0x2c] sm:$0xf]
    %v54 = vld [vmem:[%s0 + $0x30] sm:$0xf]
    %v55 = vld [vmem:[%s0 + $0x34] sm:$0xf]
    %v56 = vld [vmem:[%s0 + $0x38] sm:$0xf]
    %v57 = vld [vmem:[%s0 + $0x3c] sm:$0xf]
    %v58 = vld [vmem:[%s0 + $0x40] sm:$0xf]
    %v59 = vld [vmem:[%s0 + $0x44] sm:$0xf]
    %v60 = vld [vmem:[%s0 + $0x48] sm:$0xf]
    %v61 = vld [vmem:[%s0 + $0x4c] sm:$0xf]
    %v62 = vld [vmem:[%s0 + $0x50] sm:$0xf]
    %v63 = vld [vmem:[%s0 + $0x54] sm:$0xf]
    %v64 = vld [vmem:[%s0 + $0x58] sm:$0xf]
    %v65 = vld [vmem:[%s0 + $0x5c] sm:$0xf]
    %v66 = vld [vmem:[%s0 + $0x60] sm:$0xf]
    %v67 = vld [vmem:[%s0 + $0x64] sm:$0xf]
    %v68 = vld [vmem:[%s0 + $0x68] sm:$0xf]
    %v69 = vld [vmem:[%s0 + $0x6c] sm:$0xf]
    %v70 = vld [vmem:[%s0 + $0x70] sm:$0xf]
    %v71 = vld [vmem:[%s0 + $0x74] sm:$0xf]
    %v72 = vld [vmem:[%s0 + $0x78] sm:$0xf]
    %v73 = vld [vmem:[%s0 + $0x7c] sm:$0xf]
    %v74 = vld [vmem:[%s1] sm:$0xff]
    %v75 = vld [vmem:[%s1 + $0x8] sm:$0xff]
    %v76 = vld [vmem:[%s1 + $0x10] sm:$0xff]
    %v77 = vld [vmem:[%s1 + $0x18] sm:$0xff]
    %v78 = vld [vmem:[%s2] sm:$0x3]
    %v80 = vlaneseq
    %v81 = vshrl.u32 %v80, 7
    %v82 = vsub.s32 0, %v81
    %v83 = vrot.slane %v78, %v82
    %v84 = vlaneseq
    %v85 = vshrl.u32 %v84, 7
    %v86 = vsub.s32 1, %v85
    %v87 = vrot.slane %v78, %v86
    %v122 = vunpack.c.l.b16 %v42
    %v123 = vunpack.c.l.b16 %v43
    %v124 = vunpack.c.l.b16 %v44
    %v125 = vunpack.c.l.b16 %v45
    %v126 = vunpack.c.l.b16 %v46
    %v127 = vunpack.c.l.b16 %v47
    %v128 = vunpack.c.l.b16 %v48
    %v129 = vunpack.c.l.b16 %v49
    %v130 = vunpack.c.l.b16 %v50
    %v131 = vunpack.c.l.b16 %v51
    %v132 = vunpack.c.l.b16 %v52
    %v133 = vunpack.c.l.b16 %v53
    %v134 = vunpack.c.l.b16 %v54
    %v135 = vunpack.c.l.b16 %v55
    %v136 = vunpack.c.l.b16 %v56
    %v137 = vunpack.c.l.b16 %v57
    %v138 = vunpack.c.l.b16 %v58
    %v139 = vunpack.c.l.b16 %v59
    %v140 = vunpack.c.l.b16 %v60
    %v141 = vunpack.c.l.b16 %v61
    %v142 = vunpack.c.l.b16 %v62
    %v143 = vunpack.c.l.b16 %v63
    %v144 = vunpack.c.l.b16 %v64
    %v145 = vunpack.c.l.b16 %v65
    %v146 = vunpack.c.l.b16 %v66
    %v147 = vunpack.c.l.b16 %v67
    %v148 = vunpack.c.l.b16 %v68
    %v149 = vunpack.c.l.b16 %v69
    %v150 = vunpack.c.l.b16 %v70
    %v151 = vunpack.c.l.b16 %v71
    %v152 = vunpack.c.l.b16 %v72
    %v153 = vunpack.c.l.b16 %v73
    %v154 = vpack.c.b16 %v123, %v122
    %v155 = vpack.c.b16 %v125, %v124
    %v156 = vpack.c.b16 %v127, %v126
    %v157 = vpack.c.b16 %v129, %v128
    %v158 = vpack.c.b16 %v131, %v130
    %v159 = vpack.c.b16 %v133, %v132
    %v160 = vpack.c.b16 %v135, %v134
    %v161 = vpack.c.b16 %v137, %v136
    %v162 = vpack.c.b16 %v139, %v138
    %v163 = vpack.c.b16 %v141, %v140
    %v164 = vpack.c.b16 %v143, %v142
    %v165 = vpack.c.b16 %v145, %v144
    %v166 = vpack.c.b16 %v147, %v146
    %v167 = vpack.c.b16 %v149, %v148
    %v168 = vpack.c.b16 %v151, %v150
    %v169 = vpack.c.b16 %v153, %v152
    %v174 = vunpack.c.l.b16 %v74
    %v175 = vunpack.c.h.b16 %v74
    %v176 = vunpack.c.l.b16 %v75
    %v177 = vunpack.c.h.b16 %v75
    %v178 = vunpack.c.l.b16 %v76
    %v179 = vunpack.c.h.b16 %v76
    %v180 = vunpack.c.l.b16 %v77
    %v181 = vunpack.c.h.b16 %v77
    %v182 = vpack.c.b16 %v176, %v174
    %v183 = vpack.c.b16 %v177, %v175
    %v184 = vpack.c.b16 %v180, %v178
    %v185 = vpack.c.b16 %v181, %v179
    %vm190 = vcmask 261120
    %v192 = vsel %vm190, %v154, 0
    %v195 = vsel %vm190, %v155, 0
    %v198 = vsel %vm190, %v156, 0
    %v201 = vsel %vm190, %v157, 0
    %v204 = vsel %vm190, %v158, 0
    %v207 = vsel %vm190, %v159, 0
    %v210 = vsel %vm190, %v160, 0
    %v213 = vsel %vm190, %v161, 0
    %v216 = vsel %vm190, %v162, 0
    %v219 = vsel %vm190, %v163, 0
    %v222 = vsel %vm190, %v164, 0
    %v225 = vsel %vm190, %v165, 0
    %v228 = vsel %vm190, %v166, 0
    %v231 = vsel %vm190, %v167, 0
    %v234 = vsel %vm190, %v168, 0
    %v237 = vsel %vm190, %v169, 0
    %239 = vmatprep.subr.bf16.mxu0 %v183
    %240 = vmatpush1.bf16.msra.mxu0 %v182
    %241 = vmatprep.subr.bf16.mxu0 %v185
    %242 = vmatpush1.bf16.msra.mxu0 %v184
    %243 = vmatprep.subr.bf16.mxu0 0
    %244 = vmatpush1.bf16.msra.mxu0 0
    %245 = vmatprep.subr.bf16.mxu0 0
    %246 = vmatpush1.bf16.msra.mxu0 0
    %247 = vmatprep.subr.bf16.mxu0 0
    %248 = vmatpush1.bf16.msra.mxu0 0
    %249 = vmatprep.subr.bf16.mxu0 0
    %250 = vmatpush1.bf16.msra.mxu0 0
    %251 = vmatprep.subr.bf16.mxu0 0
    %252 = vmatpush1.bf16.msra.mxu0 0
    %253 = vmatprep.subr.bf16.mxu0 0
    %254 = vmatpush1.bf16.msra.mxu0 0
    %255 = vmatprep.subr.bf16.mxu0 0
    %256 = vmatpush1.bf16.msra.mxu0 0
    %257 = vmatprep.subr.bf16.mxu0 0
    %258 = vmatpush1.bf16.msra.mxu0 0
    %259 = vmatprep.subr.bf16.mxu0 0
    %260 = vmatpush1.bf16.msra.mxu0 0
    %261 = vmatprep.subr.bf16.mxu0 0
    %262 = vmatpush1.bf16.msra.mxu0 0
    %263 = vmatprep.subr.bf16.mxu0 0
    %264 = vmatpush1.bf16.msra.mxu0 0
    %265 = vmatprep.subr.bf16.mxu0 0
    %266 = vmatpush1.bf16.msra.mxu0 0
    %267 = vmatprep.subr.bf16.mxu0 0
    %268 = vmatpush1.bf16.msra.mxu0 0
    %269 = vmatprep.subr.bf16.mxu0 0
    %270 = vmatpush1.bf16.msra.mxu0 0
    %271 = vmatprep.mubr.bf16.mxu0 0
    %272 = vmatmul.mubr.bf16.gmra.mrb[0].mxu0 %v192
    %v273 = vpop.f32.mrb[0].mxu0
    %v274 = vadd.f32 %v83, %v273
    %v275 = vpop.f32.mrb[0].mxu0
    %v276 = vadd.f32 %v87, %v275
    %v277 = vpop.f32.mrb[0].mxu0
    %v278 = vadd.f32 %v83, %v277
    %v279 = vpop.f32.mrb[0].mxu0
    %v280 = vadd.f32 %v87, %v279
    %281 = vmatprep.mubr.bf16.mxu0 0
    %282 = vmatmul.mubr.bf16.gmra.mrb[0].mxu0 %v195
    %v283 = vpop.f32.mrb[0].mxu0
    %v284 = vadd.f32 %v83, %v283
    %v285 = vpop.f32.mrb[0].mxu0
    %v286 = vadd.f32 %v87, %v285
    %v287 = vpop.f32.mrb[0].mxu0
    %v288 = vadd.f32 %v83, %v287
    %v289 = vpop.f32.mrb[0].mxu0
    %v290 = vadd.f32 %v87, %v289
    %291 = vmatprep.mubr.bf16.mxu0 0
    %292 = vmatmul.mubr.bf16.gmra.mrb[0].mxu0 %v198
    %v293 = vpop.f32.mrb[0].mxu0
    %v294 = vadd.f32 %v83, %v293
    %v295 = vpop.f32.mrb[0].mxu0
    %v296 = vadd.f32 %v87, %v295
    %v297 = vpop.f32.mrb[0].mxu0
    %v298 = vadd.f32 %v83, %v297
    %v299 = vpop.f32.mrb[0].mxu0
    %v300 = vadd.f32 %v87, %v299
    %301 = vmatprep.mubr.bf16.mxu0 0
    %302 = vmatmul.mubr.bf16.gmra.mrb[0].mxu0 %v201
    %v303 = vpop.f32.mrb[0].mxu0
    %v304 = vadd.f32 %v83, %v303
    %v305 = vpop.f32.mrb[0].mxu0
    %v306 = vadd.f32 %v87, %v305
    %v307 = vpop.f32.mrb[0].mxu0
    %v308 = vadd.f32 %v83, %v307
    %v309 = vpop.f32.mrb[0].mxu0
    %v310 = vadd.f32 %v87, %v309
    %311 = vmatprep.mubr.bf16.mxu0 0
    %312 = vmatmul.mubr.bf16.gmra.mrb[0].mxu0 %v204
    %v313 = vpop.f32.mrb[0].mxu0
    %v314 = vadd.f32 %v83, %v313
    %v315 = vpop.f32.mrb[0].mxu0
    %v316 = vadd.f32 %v87, %v315
    %v317 = vpop.f32.mrb[0].mxu0
    %v318 = vadd.f32 %v83, %v317
    %v319 = vpop.f32.mrb[0].mxu0
    %v320 = vadd.f32 %v87, %v319
    %321 = vmatprep.mubr.bf16.mxu0 0
    %322 = vmatmul.mubr.bf16.gmra.mrb[0].mxu0 %v207
    %v323 = vpop.f32.mrb[0].mxu0
    %v324 = vadd.f32 %v83, %v323
    %v325 = vpop.f32.mrb[0].mxu0
    %v326 = vadd.f32 %v87, %v325
    %v327 = vpop.f32.mrb[0].mxu0
    %v328 = vadd.f32 %v83, %v327
    %v329 = vpop.f32.mrb[0].mxu0
    %v330 = vadd.f32 %v87, %v329
    %331 = vmatprep.mubr.bf16.mxu0 0
    %332 = vmatmul.mubr.bf16.gmra.mrb[0].mxu0 %v210
    %v333 = vpop.f32.mrb[0].mxu0
    %v334 = vadd.f32 %v83, %v333
    %v335 = vpop.f32.mrb[0].mxu0
    %v336 = vadd.f32 %v87, %v335
    %v337 = vpop.f32.mrb[0].mxu0
    %v338 = vadd.f32 %v83, %v337
    %v339 = vpop.f32.mrb[0].mxu0
    %v340 = vadd.f32 %v87, %v339
    %341 = vmatprep.mubr.bf16.mxu0 0
    %342 = vmatmul.mubr.bf16.gmra.mrb[0].mxu0 %v213
    %v343 = vpop.f32.mrb[0].mxu0
    %v344 = vadd.f32 %v83, %v343
    %v345 = vpop.f32.mrb[0].mxu0
    %v346 = vadd.f32 %v87, %v345
    %v347 = vpop.f32.mrb[0].mxu0
    %v348 = vadd.f32 %v83, %v347
    %v349 = vpop.f32.mrb[0].mxu0
    %v350 = vadd.f32 %v87, %v349
    %351 = vmatprep.mubr.bf16.mxu0 0
    %352 = vmatmul.mubr.bf16.gmra.mrb[0].mxu0 %v216
    %v353 = vpop.f32.mrb[0].mxu0
    %v354 = vadd.f32 %v83, %v353
    %v355 = vpop.f32.mrb[0].mxu0
    %v356 = vadd.f32 %v87, %v355
    %v357 = vpop.f32.mrb[0].mxu0
    %v358 = vadd.f32 %v83, %v357
    %v359 = vpop.f32.mrb[0].mxu0
    %v360 = vadd.f32 %v87, %v359
    %361 = vmatprep.mubr.bf16.mxu0 0
    %362 = vmatmul.mubr.bf16.gmra.mrb[0].mxu0 %v219
    %v363 = vpop.f32.mrb[0].mxu0
    %v364 = vadd.f32 %v83, %v363
    %v365 = vpop.f32.mrb[0].mxu0
    %v366 = vadd.f32 %v87, %v365
    %v367 = vpop.f32.mrb[0].mxu0
    %v368 = vadd.f32 %v83, %v367
    %v369 = vpop.f32.mrb[0].mxu0
    %v370 = vadd.f32 %v87, %v369
    %371 = vmatprep.mubr.bf16.mxu0 0
    %372 = vmatmul.mubr.bf16.gmra.mrb[0].mxu0 %v222
    %v373 = vpop.f32.mrb[0].mxu0
    %v374 = vadd.f32 %v83, %v373
    %v375 = vpop.f32.mrb[0].mxu0
    %v376 = vadd.f32 %v87, %v375
    %v377 = vpop.f32.mrb[0].mxu0
    %v378 = vadd.f32 %v83, %v377
    %v379 = vpop.f32.mrb[0].mxu0
    %v380 = vadd.f32 %v87, %v379
    %381 = vmatprep.mubr.bf16.mxu0 0
    %382 = vmatmul.mubr.bf16.gmra.mrb[0].mxu0 %v225
    %v383 = vpop.f32.mrb[0].mxu0
    %v384 = vadd.f32 %v83, %v383
    %v385 = vpop.f32.mrb[0].mxu0
    %v386 = vadd.f32 %v87, %v385
    %v387 = vpop.f32.mrb[0].mxu0
    %v388 = vadd.f32 %v83, %v387
    %v389 = vpop.f32.mrb[0].mxu0
    %v390 = vadd.f32 %v87, %v389
    %391 = vmatprep.mubr.bf16.mxu0 0
    %392 = vmatmul.mubr.bf16.gmra.mrb[0].mxu0 %v228
    %v393 = vpop.f32.mrb[0].mxu0
    %v394 = vadd.f32 %v83, %v393
    %v395 = vpop.f32.mrb[0].mxu0
    %v396 = vadd.f32 %v87, %v395
    %v397 = vpop.f32.mrb[0].mxu0
    %v398 = vadd.f32 %v83, %v397
    %v399 = vpop.f32.mrb[0].mxu0
    %v400 = vadd.f32 %v87, %v399
    %401 = vmatprep.mubr.bf16.mxu0 0
    %402 = vmatmul.mubr.bf16.gmra.mrb[0].mxu0 %v231
    %v403 = vpop.f32.mrb[0].mxu0
    %v404 = vadd.f32 %v83, %v403
    %v405 = vpop.f32.mrb[0].mxu0
    %v406 = vadd.f32 %v87, %v405
    %v407 = vpop.f32.mrb[0].mxu0
    %v408 = vadd.f32 %v83, %v407
    %v409 = vpop.f32.mrb[0].mxu0
    %v410 = vadd.f32 %v87, %v409
    %411 = vmatprep.mubr.bf16.mxu0 0
    %412 = vmatmul.mubr.bf16.gmra.mrb[0].mxu0 %v234
    %v413 = vpop.f32.mrb[0].mxu0
    %v414 = vadd.f32 %v83, %v413
    %v415 = vpop.f32.mrb[0].mxu0
    %v416 = vadd.f32 %v87, %v415
    %v417 = vpop.f32.mrb[0].mxu0
    %v418 = vadd.f32 %v83, %v417
    %v419 = vpop.f32.mrb[0].mxu0
    %v420 = vadd.f32 %v87, %v419
    %421 = vmatprep.mubr.bf16.mxu0 0
    %422 = vmatmul.mubr.bf16.gmra.mrb[0].mxu0 %v237
    %v423 = vpop.f32.mrb[0].mxu0
    %v424 = vadd.f32 %v83, %v423
    %v425 = vpop.f32.mrb[0].mxu0
    %v426 = vadd.f32 %v87, %v425
    %v427 = vpop.f32.mrb[0].mxu0
    %v428 = vadd.f32 %v83, %v427
    %v429 = vpop.f32.mrb[0].mxu0
    %v430 = vadd.f32 %v87, %v429
    %431 = vdwg.mxu0
    %v432 = vmax.f32 %v274, 0.0
    %v433 = vmax.f32 %v276, 0.0
    %v434 = vmax.f32 %v278, 0.0
    %v435 = vmax.f32 %v280, 0.0
    %v436 = vmax.f32 %v284, 0.0
    %v437 = vmax.f32 %v286, 0.0
    %v438 = vmax.f32 %v288, 0.0
    %v439 = vmax.f32 %v290, 0.0
    %v440 = vmax.f32 %v294, 0.0
    %v441 = vmax.f32 %v296, 0.0
    %v442 = vmax.f32 %v298, 0.0
    %v443 = vmax.f32 %v300, 0.0
    %v444 = vmax.f32 %v304, 0.0
    %v445 = vmax.f32 %v306, 0.0
    %v446 = vmax.f32 %v308, 0.0
    %v447 = vmax.f32 %v310, 0.0
    %v448 = vmax.f32 %v314, 0.0
    %v449 = vmax.f32 %v316, 0.0
    %v450 = vmax.f32 %v318, 0.0
    %v451 = vmax.f32 %v320, 0.0
    %v452 = vmax.f32 %v324, 0.0
    %v453 = vmax.f32 %v326, 0.0
    %v454 = vmax.f32 %v328, 0.0
    %v455 = vmax.f32 %v330, 0.0
    %v456 = vmax.f32 %v334, 0.0
    %v457 = vmax.f32 %v336, 0.0
    %v458 = vmax.f32 %v338, 0.0
    %v459 = vmax.f32 %v340, 0.0
    %v460 = vmax.f32 %v344, 0.0
    %v461 = vmax.f32 %v346, 0.0
    %v462 = vmax.f32 %v348, 0.0
    %v463 = vmax.f32 %v350, 0.0
    %v464 = vmax.f32 %v354, 0.0
    %v465 = vmax.f32 %v356, 0.0
    %v466 = vmax.f32 %v358, 0.0
    %v467 = vmax.f32 %v360, 0.0
    %v468 = vmax.f32 %v364, 0.0
    %v469 = vmax.f32 %v366, 0.0
    %v470 = vmax.f32 %v368, 0.0
    %v471 = vmax.f32 %v370, 0.0
    %v472 = vmax.f32 %v374, 0.0
    %v473 = vmax.f32 %v376, 0.0
    %v474 = vmax.f32 %v378, 0.0
    %v475 = vmax.f32 %v380, 0.0
    %v476 = vmax.f32 %v384, 0.0
    %v477 = vmax.f32 %v386, 0.0
    %v478 = vmax.f32 %v388, 0.0
    %v479 = vmax.f32 %v390, 0.0
    %v480 = vmax.f32 %v394, 0.0
    %v481 = vmax.f32 %v396, 0.0
    %v482 = vmax.f32 %v398, 0.0
    %v483 = vmax.f32 %v400, 0.0
    %v484 = vmax.f32 %v404, 0.0
    %v485 = vmax.f32 %v406, 0.0
    %v486 = vmax.f32 %v408, 0.0
    %v487 = vmax.f32 %v410, 0.0
    %v488 = vmax.f32 %v414, 0.0
    %v489 = vmax.f32 %v416, 0.0
    %v490 = vmax.f32 %v418, 0.0
    %v491 = vmax.f32 %v420, 0.0
    %v492 = vmax.f32 %v424, 0.0
    %v493 = vmax.f32 %v426, 0.0
    %v494 = vmax.f32 %v428, 0.0
    %v495 = vmax.f32 %v430, 0.0
    %v496 = vpack.c.bf16 %v434, %v432
    %v497 = vpack.c.bf16 %v435, %v433
    %v498 = vpack.c.bf16 %v438, %v436
    %v499 = vpack.c.bf16 %v439, %v437
    %v500 = vpack.c.bf16 %v442, %v440
    %v501 = vpack.c.bf16 %v443, %v441
    %v502 = vpack.c.bf16 %v446, %v444
    %v503 = vpack.c.bf16 %v447, %v445
    %v504 = vpack.c.bf16 %v450, %v448
    %v505 = vpack.c.bf16 %v451, %v449
    %v506 = vpack.c.bf16 %v454, %v452
    %v507 = vpack.c.bf16 %v455, %v453
    %v508 = vpack.c.bf16 %v458, %v456
    %v509 = vpack.c.bf16 %v459, %v457
    %v510 = vpack.c.bf16 %v462, %v460
    %v511 = vpack.c.bf16 %v463, %v461
    %v512 = vpack.c.bf16 %v466, %v464
    %v513 = vpack.c.bf16 %v467, %v465
    %v514 = vpack.c.bf16 %v470, %v468
    %v515 = vpack.c.bf16 %v471, %v469
    %v516 = vpack.c.bf16 %v474, %v472
    %v517 = vpack.c.bf16 %v475, %v473
    %v518 = vpack.c.bf16 %v478, %v476
    %v519 = vpack.c.bf16 %v479, %v477
    %v520 = vpack.c.bf16 %v482, %v480
    %v521 = vpack.c.bf16 %v483, %v481
    %v522 = vpack.c.bf16 %v486, %v484
    %v523 = vpack.c.bf16 %v487, %v485
    %v524 = vpack.c.bf16 %v490, %v488
    %v525 = vpack.c.bf16 %v491, %v489
    %v526 = vpack.c.bf16 %v494, %v492
    %v527 = vpack.c.bf16 %v495, %v493
    %v528 = vld [vmem:[#allocation2] sm:$0xff]
    %v529 = vld [vmem:[#allocation2 + $0x8] sm:$0xff]
    %v530 = vld [vmem:[#allocation2 + $0x10] sm:$0xff]
    %v531 = vld [vmem:[#allocation2 + $0x18] sm:$0xff]
    %v532 = vld [vmem:[#allocation2 + $0x20] sm:$0xff]
    %v533 = vld [vmem:[#allocation2 + $0x28] sm:$0xff]
    %v534 = vld [vmem:[#allocation2 + $0x30] sm:$0xff]
    %v535 = vld [vmem:[#allocation2 + $0x38] sm:$0xff]
    %v536 = vld [vmem:[#allocation2 + $0x40] sm:$0xff]
    %v537 = vld [vmem:[#allocation2 + $0x48] sm:$0xff]
    %v538 = vld [vmem:[#allocation2 + $0x50] sm:$0xff]
    %v539 = vld [vmem:[#allocation2 + $0x58] sm:$0xff]
    %v540 = vld [vmem:[#allocation2 + $0x60] sm:$0xff]
    %v541 = vld [vmem:[#allocation2 + $0x68] sm:$0xff]
    %v542 = vld [vmem:[#allocation2 + $0x70] sm:$0xff]
    %v543 = vld [vmem:[#allocation2 + $0x78] sm:$0xff]
    %v544 = vld [vmem:[#allocation2 + $0x80] sm:$0xff]
    %v545 = vld [vmem:[#allocation2 + $0x88] sm:$0xff]
    %v546 = vld [vmem:[#allocation2 + $0x90] sm:$0xff]
    %v547 = vld [vmem:[#allocation2 + $0x98] sm:$0xff]
    %v548 = vld [vmem:[#allocation2 + $0xa0] sm:$0xff]
    %v549 = vld [vmem:[#allocation2 + $0xa8] sm:$0xff]
    %v550 = vld [vmem:[#allocation2 + $0xb0] sm:$0xff]
    %v551 = vld [vmem:[#allocation2 + $0xb8] sm:$0xff]
    %v552 = vld [vmem:[#allocation2 + $0xc0] sm:$0xff]
    %v553 = vld [vmem:[#allocation2 + $0xc8] sm:$0xff]
    %v554 = vld [vmem:[#allocation2 + $0xd0] sm:$0xff]
    %v555 = vld [vmem:[#allocation2 + $0xd8] sm:$0xff]
    %v556 = vld [vmem:[#allocation2 + $0xe0] sm:$0xff]
    %v557 = vld [vmem:[#allocation2 + $0xe8] sm:$0xff]
    %v558 = vld [vmem:[#allocation2 + $0xf0] sm:$0xff]
    %v559 = vld [vmem:[#allocation2 + $0xf8] sm:$0xff]
    %v560 = vld [vmem:[%s4] sm:$0x3]
    %v562 = vlaneseq
    %v563 = vshrl.u32 %v562, 7
    %v564 = vsub.s32 0, %v563
    %v565 = vrot.slane %v560, %v564
    %v566 = vlaneseq
    %v567 = vshrl.u32 %v566, 7
    %v568 = vsub.s32 1, %v567
    %v569 = vrot.slane %v560, %v568
    %v604 = vunpack.c.l.b16 %v528
    %v605 = vunpack.c.h.b16 %v528
    %v606 = vunpack.c.l.b16 %v529
    %v607 = vunpack.c.h.b16 %v529
    %v608 = vunpack.c.l.b16 %v530
    %v609 = vunpack.c.h.b16 %v530
    %v610 = vunpack.c.l.b16 %v531
    %v611 = vunpack.c.h.b16 %v531
    %v612 = vunpack.c.l.b16 %v532
    %v613 = vunpack.c.h.b16 %v532
    %v614 = vunpack.c.l.b16 %v533
    %v615 = vunpack.c.h.b16 %v533
    %v616 = vunpack.c.l.b16 %v534
    %v617 = vunpack.c.h.b16 %v534
    %v618 = vunpack.c.l.b16 %v535
    %v619 = vunpack.c.h.b16 %v535
    %v620 = vunpack.c.l.b16 %v536
    %v621 = vunpack.c.h.b16 %v536
    %v622 = vunpack.c.l.b16 %v537
    %v623 = vunpack.c.h.b16 %v537
    %v624 = vunpack.c.l.b16 %v538
    %v625 = vunpack.c.h.b16 %v538
    %v626 = vunpack.c.l.b16 %v539
    %v627 = vunpack.c.h.b16 %v539
    %v628 = vunpack.c.l.b16 %v540
    %v629 = vunpack.c.h.b16 %v540
    %v630 = vunpack.c.l.b16 %v541
    %v631 = vunpack.c.h.b16 %v541
    %v632 = vunpack.c.l.b16 %v542
    %v633 = vunpack.c.h.b16 %v542
    %v634 = vunpack.c.l.b16 %v543
    %v635 = vunpack.c.h.b16 %v543
    %v636 = vunpack.c.l.b16 %v544
    %v637 = vunpack.c.h.b16 %v544
    %v638 = vunpack.c.l.b16 %v545
    %v639 = vunpack.c.h.b16 %v545
    %v640 = vunpack.c.l.b16 %v546
    %v641 = vunpack.c.h.b16 %v546
    %v642 = vunpack.c.l.b16 %v547
    %v643 = vunpack.c.h.b16 %v547
    %v644 = vunpack.c.l.b16 %v548
    %v645 = vunpack.c.h.b16 %v548
    %v646 = vunpack.c.l.b16 %v549
    %v647 = vunpack.c.h.b16 %v549
    %v648 = vunpack.c.l.b16 %v550
    %v649 = vunpack.c.h.b16 %v550
    %v650 = vunpack.c.l.b16 %v551
    %v651 = vunpack.c.h.b16 %v551
    %v652 = vunpack.c.l.b16 %v552
    %v653 = vunpack.c.h.b16 %v552
    %v654 = vunpack.c.l.b16 %v553
    %v655 = vunpack.c.h.b16 %v553
    %v656 = vunpack.c.l.b16 %v554
    %v657 = vunpack.c.h.b16 %v554
    %v658 = vunpack.c.l.b16 %v555
    %v659 = vunpack.c.h.b16 %v555
    %v660 = vunpack.c.l.b16 %v556
    %v661 = vunpack.c.h.b16 %v556
    %v662 = vunpack.c.l.b16 %v557
    %v663 = vunpack.c.h.b16 %v557
    %v664 = vunpack.c.l.b16 %v558
    %v665 = vunpack.c.h.b16 %v558
    %v666 = vunpack.c.l.b16 %v559
    %v667 = vunpack.c.h.b16 %v559
    %v668 = vpack.c.b16 %v606, %v604
    %v669 = vpack.c.b16 %v607, %v605
    %v670 = vpack.c.b16 %v610, %v608
    %v671 = vpack.c.b16 %v611, %v609
    %v672 = vpack.c.b16 %v614, %v612
    %v673 = vpack.c.b16 %v615, %v613
    %v674 = vpack.c.b16 %v618, %v616
    %v675 = vpack.c.b16 %v619, %v617
    %v676 = vpack.c.b16 %v622, %v620
    %v677 = vpack.c.b16 %v623, %v621
    %v678 = vpack.c.b16 %v626, %v624
    %v679 = vpack.c.b16 %v627, %v625
    %v680 = vpack.c.b16 %v630, %v628
    %v681 = vpack.c.b16 %v631, %v629
    %v682 = vpack.c.b16 %v634, %v632
    %v683 = vpack.c.b16 %v635, %v633
    %v684 = vpack.c.b16 %v638, %v636
    %v685 = vpack.c.b16 %v639, %v637
    %v686 = vpack.c.b16 %v642, %v640
    %v687 = vpack.c.b16 %v643, %v641
    %v688 = vpack.c.b16 %v646, %v644
    %v689 = vpack.c.b16 %v647, %v645
    %v690 = vpack.c.b16 %v650, %v648
    %v691 = vpack.c.b16 %v651, %v649
    %v692 = vpack.c.b16 %v654, %v652
    %v693 = vpack.c.b16 %v655, %v653
    %v694 = vpack.c.b16 %v658, %v656
    %v695 = vpack.c.b16 %v659, %v657
    %v696 = vpack.c.b16 %v662, %v660
    %v697 = vpack.c.b16 %v663, %v661
    %v698 = vpack.c.b16 %v666, %v664
    %v699 = vpack.c.b16 %v667, %v665
    %732 = vmatprep.subr.bf16.mxu0 %v669
    %733 = vmatpush1.bf16.msra.mxu0 %v668
    %734 = vmatprep.subr.bf16.mxu0 %v671
    %735 = vmatpush1.bf16.msra.mxu0 %v670
    %736 = vmatprep.subr.bf16.mxu0 %v673
    %737 = vmatpush1.bf16.msra.mxu0 %v672
    %738 = vmatprep.subr.bf16.mxu0 %v675
    %739 = vmatpush1.bf16.msra.mxu0 %v674
    %740 = vmatprep.subr.bf16.mxu0 %v677
    %741 = vmatpush1.bf16.msra.mxu0 %v676
    %742 = vmatprep.subr.bf16.mxu0 %v679
    %743 = vmatpush1.bf16.msra.mxu0 %v678
    %744 = vmatprep.subr.bf16.mxu0 %v681
    %745 = vmatpush1.bf16.msra.mxu0 %v680
    %746 = vmatprep.subr.bf16.mxu0 %v683
    %747 = vmatpush1.bf16.msra.mxu0 %v682
    %748 = vmatprep.subr.bf16.mxu0 %v685
    %749 = vmatpush1.bf16.msra.mxu0 %v684
    %750 = vmatprep.subr.bf16.mxu0 %v687
    %751 = vmatpush1.bf16.msra.mxu0 %v686
    %752 = vmatprep.subr.bf16.mxu0 %v689
    %753 = vmatpush1.bf16.msra.mxu0 %v688
    %754 = vmatprep.subr.bf16.mxu0 %v691
    %755 = vmatpush1.bf16.msra.mxu0 %v690
    %756 = vmatprep.subr.bf16.mxu0 %v693
    %757 = vmatpush1.bf16.msra.mxu0 %v692
    %758 = vmatprep.subr.bf16.mxu0 %v695
    %759 = vmatpush1.bf16.msra.mxu0 %v694
    %760 = vmatprep.subr.bf16.mxu0 %v697
    %761 = vmatpush1.bf16.msra.mxu0 %v696
    %762 = vmatprep.subr.bf16.mxu0 %v699
    %763 = vmatpush1.bf16.msra.mxu0 %v698
    %764 = vmatprep.mubr.bf16.mxu0 %v497
    %765 = vmatmul.mubr.bf16.gmra.mrb[0].mxu0 %v496
    %v766 = vpop.f32.mrb[0].mxu0
    %v767 = vadd.f32 %v565, %v766
    %v768 = vpop.f32.mrb[0].mxu0
    %v769 = vadd.f32 %v569, %v768
    %v770 = vpop.f32.mrb[0].mxu0
    %v771 = vadd.f32 %v565, %v770
    %v772 = vpop.f32.mrb[0].mxu0
    %v773 = vadd.f32 %v569, %v772
    %774 = vmatprep.mubr.bf16.mxu0 %v499
    %775 = vmatmul.mubr.bf16.gmra.mrb[0].mxu0 %v498
    %v776 = vpop.f32.mrb[0].mxu0
    %v777 = vadd.f32 %v565, %v776
    %v778 = vpop.f32.mrb[0].mxu0
    %v779 = vadd.f32 %v569, %v778
    %v780 = vpop.f32.mrb[0].mxu0
    %v781 = vadd.f32 %v565, %v780
    %v782 = vpop.f32.mrb[0].mxu0
    %v783 = vadd.f32 %v569, %v782
    %784 = vmatprep.mubr.bf16.mxu0 %v501
    %785 = vmatmul.mubr.bf16.gmra.mrb[0].mxu0 %v500
    %v786 = vpop.f32.mrb[0].mxu0
    %v787 = vadd.f32 %v565, %v786
    %v788 = vpop.f32.mrb[0].mxu0
    %v789 = vadd.f32 %v569, %v788
    %v790 = vpop.f32.mrb[0].mxu0
    %v791 = vadd.f32 %v565, %v790
    %v792 = vpop.f32.mrb[0].mxu0
    %v793 = vadd.f32 %v569, %v792
    %794 = vmatprep.mubr.bf16.mxu0 %v503
    %795 = vmatmul.mubr.bf16.gmra.mrb[0].mxu0 %v502
    %v796 = vpop.f32.mrb[0].mxu0
    %v797 = vadd.f32 %v565, %v796
    %v798 = vpop.f32.mrb[0].mxu0
    %v799 = vadd.f32 %v569, %v798
    %v800 = vpop.f32.mrb[0].mxu0
    %v801 = vadd.f32 %v565, %v800
    %v802 = vpop.f32.mrb[0].mxu0
    %v803 = vadd.f32 %v569, %v802
    %804 = vmatprep.mubr.bf16.mxu0 %v505
    %805 = vmatmul.mubr.bf16.gmra.mrb[0].mxu0 %v504
    %v806 = vpop.f32.mrb[0].mxu0
    %v807 = vadd.f32 %v565, %v806
    %v808 = vpop.f32.mrb[0].mxu0
    %v809 = vadd.f32 %v569, %v808
    %v810 = vpop.f32.mrb[0].mxu0
    %v811 = vadd.f32 %v565, %v810
    %v812 = vpop.f32.mrb[0].mxu0
    %v813 = vadd.f32 %v569, %v812
    %814 = vmatprep.mubr.bf16.mxu0 %v507
    %815 = vmatmul.mubr.bf16.gmra.mrb[0].mxu0 %v506
    %v816 = vpop.f32.mrb[0].mxu0
    %v817 = vadd.f32 %v565, %v816
    %v818 = vpop.f32.mrb[0].mxu0
    %v819 = vadd.f32 %v569, %v818
    %v820 = vpop.f32.mrb[0].mxu0
    %v821 = vadd.f32 %v565, %v820
    %v822 = vpop.f32.mrb[0].mxu0
    %v823 = vadd.f32 %v569, %v822
    %824 = vmatprep.mubr.bf16.mxu0 %v509
    %825 = vmatmul.mubr.bf16.gmra.mrb[0].mxu0 %v508
    %v826 = vpop.f32.mrb[0].mxu0
    %v827 = vadd.f32 %v565, %v826
    %v828 = vpop.f32.mrb[0].mxu0
    %v829 = vadd.f32 %v569, %v828
    %v830 = vpop.f32.mrb[0].mxu0
    %v831 = vadd.f32 %v565, %v830
    %v832 = vpop.f32.mrb[0].mxu0
    %v833 = vadd.f32 %v569, %v832
    %834 = vmatprep.mubr.bf16.mxu0 %v511
    %835 = vmatmul.mubr.bf16.gmra.mrb[0].mxu0 %v510
    %v836 = vpop.f32.mrb[0].mxu0
    %v837 = vadd.f32 %v565, %v836
    %v838 = vpop.f32.mrb[0].mxu0
    %v839 = vadd.f32 %v569, %v838
    %v840 = vpop.f32.mrb[0].mxu0
    %v841 = vadd.f32 %v565, %v840
    %v842 = vpop.f32.mrb[0].mxu0
    %v843 = vadd.f32 %v569, %v842
    %844 = vmatprep.mubr.bf16.mxu0 %v513
    %845 = vmatmul.mubr.bf16.gmra.mrb[0].mxu0 %v512
    %v846 = vpop.f32.mrb[0].mxu0
    %v847 = vadd.f32 %v565, %v846
    %v848 = vpop.f32.mrb[0].mxu0
    %v849 = vadd.f32 %v569, %v848
    %v850 = vpop.f32.mrb[0].mxu0
    %v851 = vadd.f32 %v565, %v850
    %v852 = vpop.f32.mrb[0].mxu0
    %v853 = vadd.f32 %v569, %v852
    %854 = vmatprep.mubr.bf16.mxu0 %v515
    %855 = vmatmul.mubr.bf16.gmra.mrb[0].mxu0 %v514
    %v856 = vpop.f32.mrb[0].mxu0
    %v857 = vadd.f32 %v565, %v856
    %v858 = vpop.f32.mrb[0].mxu0
    %v859 = vadd.f32 %v569, %v858
    %v860 = vpop.f32.mrb[0].mxu0
    %v861 = vadd.f32 %v565, %v860
    %v862 = vpop.f32.mrb[0].mxu0
    %v863 = vadd.f32 %v569, %v862
    %864 = vmatprep.mubr.bf16.mxu0 %v517
    %865 = vmatmul.mubr.bf16.gmra.mrb[0].mxu0 %v516
    %v866 = vpop.f32.mrb[0].mxu0
    %v867 = vadd.f32 %v565, %v866
    %v868 = vpop.f32.mrb[0].mxu0
    %v869 = vadd.f32 %v569, %v868
    %v870 = vpop.f32.mrb[0].mxu0
    %v871 = vadd.f32 %v565, %v870
    %v872 = vpop.f32.mrb[0].mxu0
    %v873 = vadd.f32 %v569, %v872
    %874 = vmatprep.mubr.bf16.mxu0 %v519
    %875 = vmatmul.mubr.bf16.gmra.mrb[0].mxu0 %v518
    %v876 = vpop.f32.mrb[0].mxu0
    %v877 = vadd.f32 %v565, %v876
    %v878 = vpop.f32.mrb[0].mxu0
    %v879 = vadd.f32 %v569, %v878
    %v880 = vpop.f32.mrb[0].mxu0
    %v881 = vadd.f32 %v565, %v880
    %v882 = vpop.f32.mrb[0].mxu0
    %v883 = vadd.f32 %v569, %v882
    %884 = vmatprep.mubr.bf16.mxu0 %v521
    %885 = vmatmul.mubr.bf16.gmra.mrb[0].mxu0 %v520
    %v886 = vpop.f32.mrb[0].mxu0
    %v887 = vadd.f32 %v565, %v886
    %v888 = vpop.f32.mrb[0].mxu0
    %v889 = vadd.f32 %v569, %v888
    %v890 = vpop.f32.mrb[0].mxu0
    %v891 = vadd.f32 %v565, %v890
    %v892 = vpop.f32.mrb[0].mxu0
    %v893 = vadd.f32 %v569, %v892
    %894 = vmatprep.mubr.bf16.mxu0 %v523
    %895 = vmatmul.mubr.bf16.gmra.mrb[0].mxu0 %v522
    %v896 = vpop.f32.mrb[0].mxu0
    %v897 = vadd.f32 %v565, %v896
    %v898 = vpop.f32.mrb[0].mxu0
    %v899 = vadd.f32 %v569, %v898
    %v900 = vpop.f32.mrb[0].mxu0
    %v901 = vadd.f32 %v565, %v900
    %v902 = vpop.f32.mrb[0].mxu0
    %v903 = vadd.f32 %v569, %v902
    %904 = vmatprep.mubr.bf16.mxu0 %v525
    %905 = vmatmul.mubr.bf16.gmra.mrb[0].mxu0 %v524
    %v906 = vpop.f32.mrb[0].mxu0
    %v907 = vadd.f32 %v565, %v906
    %v908 = vpop.f32.mrb[0].mxu0
    %v909 = vadd.f32 %v569, %v908
    %v910 = vpop.f32.mrb[0].mxu0
    %v911 = vadd.f32 %v565, %v910
    %v912 = vpop.f32.mrb[0].mxu0
    %v913 = vadd.f32 %v569, %v912
    %914 = vmatprep.mubr.bf16.mxu0 %v527
    %915 = vmatmul.mubr.bf16.gmra.mrb[0].mxu0 %v526
    %v916 = vpop.f32.mrb[0].mxu0
    %v917 = vadd.f32 %v565, %v916
    %v918 = vpop.f32.mrb[0].mxu0
    %v919 = vadd.f32 %v569, %v918
    %v920 = vpop.f32.mrb[0].mxu0
    %v921 = vadd.f32 %v565, %v920
    %v922 = vpop.f32.mrb[0].mxu0
    %v923 = vadd.f32 %v569, %v922
    %924 = vdwg.mxu0
    %v925 = vmax.f32 %v767, 0.0
    %v926 = vmax.f32 %v769, 0.0
    %v927 = vmax.f32 %v771, 0.0
    %v928 = vmax.f32 %v773, 0.0
    %v929 = vmax.f32 %v777, 0.0
    %v930 = vmax.f32 %v779, 0.0
    %v931 = vmax.f32 %v781, 0.0
    %v932 = vmax.f32 %v783, 0.0
    %v933 = vmax.f32 %v787, 0.0
    %v934 = vmax.f32 %v789, 0.0
    %v935 = vmax.f32 %v791, 0.0
    %v936 = vmax.f32 %v793, 0.0
    %v937 = vmax.f32 %v797, 0.0
    %v938 = vmax.f32 %v799, 0.0
    %v939 = vmax.f32 %v801, 0.0
    %v940 = vmax.f32 %v803, 0.0
    %v941 = vmax.f32 %v807, 0.0
    %v942 = vmax.f32 %v809, 0.0
    %v943 = vmax.f32 %v811, 0.0
    %v944 = vmax.f32 %v813, 0.0
    %v945 = vmax.f32 %v817, 0.0
    %v946 = vmax.f32 %v819, 0.0
    %v947 = vmax.f32 %v821, 0.0
    %v948 = vmax.f32 %v823, 0.0
    %v949 = vmax.f32 %v827, 0.0
    %v950 = vmax.f32 %v829, 0.0
    %v951 = vmax.f32 %v831, 0.0
    %v952 = vmax.f32 %v833, 0.0
    %v953 = vmax.f32 %v837, 0.0
    %v954 = vmax.f32 %v839, 0.0
    %v955 = vmax.f32 %v841, 0.0
    %v956 = vmax.f32 %v843, 0.0
    %v957 = vmax.f32 %v847, 0.0
    %v958 = vmax.f32 %v849, 0.0
    %v959 = vmax.f32 %v851, 0.0
    %v960 = vmax.f32 %v853, 0.0
    %v961 = vmax.f32 %v857, 0.0
    %v962 = vmax.f32 %v859, 0.0
    %v963 = vmax.f32 %v861, 0.0
    %v964 = vmax.f32 %v863, 0.0
    %v965 = vmax.f32 %v867, 0.0
    %v966 = vmax.f32 %v869, 0.0
    %v967 = vmax.f32 %v871, 0.0
    %v968 = vmax.f32 %v873, 0.0
    %v969 = vmax.f32 %v877, 0.0
    %v970 = vmax.f32 %v879, 0.0
    %v971 = vmax.f32 %v881, 0.0
    %v972 = vmax.f32 %v883, 0.0
    %v973 = vmax.f32 %v887, 0.0
    %v974 = vmax.f32 %v889, 0.0
    %v975 = vmax.f32 %v891, 0.0
    %v976 = vmax.f32 %v893, 0.0
    %v977 = vmax.f32 %v897, 0.0
    %v978 = vmax.f32 %v899, 0.0
    %v979 = vmax.f32 %v901, 0.0
    %v980 = vmax.f32 %v903, 0.0
    %v981 = vmax.f32 %v907, 0.0
    %v982 = vmax.f32 %v909, 0.0
    %v983 = vmax.f32 %v911, 0.0
    %v984 = vmax.f32 %v913, 0.0
    %v985 = vmax.f32 %v917, 0.0
    %v986 = vmax.f32 %v919, 0.0
    %v987 = vmax.f32 %v921, 0.0
    %v988 = vmax.f32 %v923, 0.0
    %v989 = vpack.c.bf16 %v927, %v925
    %v990 = vpack.c.bf16 %v928, %v926
    %v991 = vpack.c.bf16 %v931, %v929
    %v992 = vpack.c.bf16 %v932, %v930
    %v993 = vpack.c.bf16 %v935, %v933
    %v994 = vpack.c.bf16 %v936, %v934
    %v995 = vpack.c.bf16 %v939, %v937
    %v996 = vpack.c.bf16 %v940, %v938
    %v997 = vpack.c.bf16 %v943, %v941
    %v998 = vpack.c.bf16 %v944, %v942
    %v999 = vpack.c.bf16 %v947, %v945
    %v1000 = vpack.c.bf16 %v948, %v946
    %v1001 = vpack.c.bf16 %v951, %v949
    %v1002 = vpack.c.bf16 %v952, %v950
    %v1003 = vpack.c.bf16 %v955, %v953
    %v1004 = vpack.c.bf16 %v956, %v954
    %v1005 = vpack.c.bf16 %v959, %v957
    %v1006 = vpack.c.bf16 %v960, %v958
    %v1007 = vpack.c.bf16 %v963, %v961
    %v1008 = vpack.c.bf16 %v964, %v962
    %v1009 = vpack.c.bf16 %v967, %v965
    %v1010 = vpack.c.bf16 %v968, %v966
    %v1011 = vpack.c.bf16 %v971, %v969
    %v1012 = vpack.c.bf16 %v972, %v970
    %v1013 = vpack.c.bf16 %v975, %v973
    %v1014 = vpack.c.bf16 %v976, %v974
    %v1015 = vpack.c.bf16 %v979, %v977
    %v1016 = vpack.c.bf16 %v980, %v978
    %v1017 = vpack.c.bf16 %v983, %v981
    %v1018 = vpack.c.bf16 %v984, %v982
    %v1019 = vpack.c.bf16 %v987, %v985
    %v1020 = vpack.c.bf16 %v988, %v986
    %v1021 = vld [vmem:[%s5] sm:$0xf]
    %v1022 = vld [vmem:[%s5 + $0x4] sm:$0xf]
    %v1023 = vld [vmem:[%s5 + $0x8] sm:$0xf]
    %v1024 = vld [vmem:[%s5 + $0xc] sm:$0xf]
    %v1025 = vld [vmem:[%s5 + $0x10] sm:$0xf]
    %v1026 = vld [vmem:[%s5 + $0x14] sm:$0xf]
    %v1027 = vld [vmem:[%s5 + $0x18] sm:$0xf]
    %v1028 = vld [vmem:[%s5 + $0x1c] sm:$0xf]
    %v1029 = vld [vmem:[%s5 + $0x20] sm:$0xf]
    %v1030 = vld [vmem:[%s5 + $0x24] sm:$0xf]
    %v1031 = vld [vmem:[%s5 + $0x28] sm:$0xf]
    %v1032 = vld [vmem:[%s5 + $0x2c] sm:$0xf]
    %v1033 = vld [vmem:[%s5 + $0x30] sm:$0xf]
    %v1034 = vld [vmem:[%s5 + $0x34] sm:$0xf]
    %v1035 = vld [vmem:[%s5 + $0x38] sm:$0xf]
    %v1036 = vld [vmem:[%s5 + $0x3c] sm:$0xf]
    %v1037 = vld [vmem:[%s5 + $0x40] sm:$0xf]
    %v1038 = vld [vmem:[%s5 + $0x44] sm:$0xf]
    %v1039 = vld [vmem:[%s5 + $0x48] sm:$0xf]
    %v1040 = vld [vmem:[%s5 + $0x4c] sm:$0xf]
    %v1041 = vld [vmem:[%s5 + $0x50] sm:$0xf]
    %v1042 = vld [vmem:[%s5 + $0x54] sm:$0xf]
    %v1043 = vld [vmem:[%s5 + $0x58] sm:$0xf]
    %v1044 = vld [vmem:[%s5 + $0x5c] sm:$0xf]
    %v1045 = vld [vmem:[%s5 + $0x60] sm:$0xf]
    %v1046 = vld [vmem:[%s5 + $0x64] sm:$0xf]
    %v1047 = vld [vmem:[%s5 + $0x68] sm:$0xf]
    %v1048 = vld [vmem:[%s5 + $0x6c] sm:$0xf]
    %v1049 = vld [vmem:[%s5 + $0x70] sm:$0xf]
    %v1050 = vld [vmem:[%s5 + $0x74] sm:$0xf]
    %v1051 = vld [vmem:[%s5 + $0x78] sm:$0xf]
    %v1052 = vld [vmem:[%s5 + $0x7c] sm:$0xf]
    %v1053 = vld [vmem:[%s6] sm:$0x1]
    %v1055 = vlaneseq
    %v1056 = vshrl.u32 %v1055, 7
    %v1057 = vsub.s32 0, %v1056
    %v1058 = vrot.slane %v1053, %v1057
    %v1092 = vunpack.c.l.b16 %v1021
    %v1093 = vunpack.c.l.b16 %v1022
    %v1094 = vunpack.c.l.b16 %v1023
    %v1095 = vunpack.c.l.b16 %v1024
    %v1096 = vunpack.c.l.b16 %v1025
    %v1097 = vunpack.c.l.b16 %v1026
    %v1098 = vunpack.c.l.b16 %v1027
    %v1099 = vunpack.c.l.b16 %v1028
    %v1100 = vunpack.c.l.b16 %v1029
    %v1101 = vunpack.c.l.b16 %v1030
    %v1102 = vunpack.c.l.b16 %v1031
    %v1103 = vunpack.c.l.b16 %v1032
    %v1104 = vunpack.c.l.b16 %v1033
    %v1105 = vunpack.c.l.b16 %v1034
    %v1106 = vunpack.c.l.b16 %v1035
    %v1107 = vunpack.c.l.b16 %v1036
    %v1108 = vunpack.c.l.b16 %v1037
    %v1109 = vunpack.c.l.b16 %v1038
    %v1110 = vunpack.c.l.b16 %v1039
    %v1111 = vunpack.c.l.b16 %v1040
    %v1112 = vunpack.c.l.b16 %v1041
    %v1113 = vunpack.c.l.b16 %v1042
    %v1114 = vunpack.c.l.b16 %v1043
    %v1115 = vunpack.c.l.b16 %v1044
    %v1116 = vunpack.c.l.b16 %v1045
    %v1117 = vunpack.c.l.b16 %v1046
    %v1118 = vunpack.c.l.b16 %v1047
    %v1119 = vunpack.c.l.b16 %v1048
    %v1120 = vunpack.c.l.b16 %v1049
    %v1121 = vunpack.c.l.b16 %v1050
    %v1122 = vunpack.c.l.b16 %v1051
    %v1123 = vunpack.c.l.b16 %v1052
    %v1124 = vpack.c.b16 %v1093, %v1092
    %v1125 = vpack.c.b16 %v1095, %v1094
    %v1126 = vpack.c.b16 %v1097, %v1096
    %v1127 = vpack.c.b16 %v1099, %v1098
    %v1128 = vpack.c.b16 %v1101, %v1100
    %v1129 = vpack.c.b16 %v1103, %v1102
    %v1130 = vpack.c.b16 %v1105, %v1104
    %v1131 = vpack.c.b16 %v1107, %v1106
    %v1132 = vpack.c.b16 %v1109, %v1108
    %v1133 = vpack.c.b16 %v1111, %v1110
    %v1134 = vpack.c.b16 %v1113, %v1112
    %v1135 = vpack.c.b16 %v1115, %v1114
    %v1136 = vpack.c.b16 %v1117, %v1116
    %v1137 = vpack.c.b16 %v1119, %v1118
    %v1138 = vpack.c.b16 %v1121, %v1120
    %v1139 = vpack.c.b16 %v1123, %v1122
    %1156 = vmatprep.subr.bf16.mxu0 0
    %1157 = vmatpush1.bf16.msra.mxu0 %v1124
    %1158 = vmatprep.subr.bf16.mxu0 0
    %1159 = vmatpush1.bf16.msra.mxu0 %v1125
    %1160 = vmatprep.subr.bf16.mxu0 0
    %1161 = vmatpush1.bf16.msra.mxu0 %v1126
    %1162 = vmatprep.subr.bf16.mxu0 0
    %1163 = vmatpush1.bf16.msra.mxu0 %v1127
    %1164 = vmatprep.subr.bf16.mxu0 0
    %1165 = vmatpush1.bf16.msra.mxu0 %v1128
    %1166 = vmatprep.subr.bf16.mxu0 0
    %1167 = vmatpush1.bf16.msra.mxu0 %v1129
    %1168 = vmatprep.subr.bf16.mxu0 0
    %1169 = vmatpush1.bf16.msra.mxu0 %v1130
    %1170 = vmatprep.subr.bf16.mxu0 0
    %1171 = vmatpush1.bf16.msra.mxu0 %v1131
    %1172 = vmatprep.subr.bf16.mxu0 0
    %1173 = vmatpush1.bf16.msra.mxu0 %v1132
    %1174 = vmatprep.subr.bf16.mxu0 0
    %1175 = vmatpush1.bf16.msra.mxu0 %v1133
    %1176 = vmatprep.subr.bf16.mxu0 0
    %1177 = vmatpush1.bf16.msra.mxu0 %v1134
    %1178 = vmatprep.subr.bf16.mxu0 0
    %1179 = vmatpush1.bf16.msra.mxu0 %v1135
    %1180 = vmatprep.subr.bf16.mxu0 0
    %1181 = vmatpush1.bf16.msra.mxu0 %v1136
    %1182 = vmatprep.subr.bf16.mxu0 0
    %1183 = vmatpush1.bf16.msra.mxu0 %v1137
    %1184 = vmatprep.subr.bf16.mxu0 0
    %1185 = vmatpush1.bf16.msra.mxu0 %v1138
    %1186 = vmatprep.subr.bf16.mxu0 0
    %1187 = vmatpush1.bf16.msra.mxu0 %v1139
    %1188 = vmatprep.mubr.bf16.mxu0 %v990
    %1189 = vmatmul.mubr.bf16.gmra.mrb[0].mxu0 %v989
    %v1190 = vpop.f32.mrb[0].mxu0
    %v1191 = vadd.f32 %v1058, %v1190
    %v1192 = vpop.f32.mrb[0].mxu0
    %v1193 = vpop.f32.mrb[0].mxu0
    %v1194 = vadd.f32 %v1058, %v1193
    %v1195 = vpop.f32.mrb[0].mxu0
    %1196 = vmatprep.mubr.bf16.mxu0 %v992
    %1197 = vmatmul.mubr.bf16.gmra.mrb[0].mxu0 %v991
    %v1198 = vpop.f32.mrb[0].mxu0
    %v1199 = vadd.f32 %v1058, %v1198
    %v1200 = vpop.f32.mrb[0].mxu0
    %v1201 = vpop.f32.mrb[0].mxu0
    %v1202 = vadd.f32 %v1058, %v1201
    %v1203 = vpop.f32.mrb[0].mxu0
    %1204 = vmatprep.mubr.bf16.mxu0 %v994
    %1205 = vmatmul.mubr.bf16.gmra.mrb[0].mxu0 %v993
    %v1206 = vpop.f32.mrb[0].mxu0
    %v1207 = vadd.f32 %v1058, %v1206
    %v1208 = vpop.f32.mrb[0].mxu0
    %v1209 = vpop.f32.mrb[0].mxu0
    %v1210 = vadd.f32 %v1058, %v1209
    %v1211 = vpop.f32.mrb[0].mxu0
    %1212 = vmatprep.mubr.bf16.mxu0 %v996
    %1213 = vmatmul.mubr.bf16.gmra.mrb[0].mxu0 %v995
    %v1214 = vpop.f32.mrb[0].mxu0
    %v1215 = vadd.f32 %v1058, %v1214
    %v1216 = vpop.f32.mrb[0].mxu0
    %v1217 = vpop.f32.mrb[0].mxu0
    %v1218 = vadd.f32 %v1058, %v1217
    %v1219 = vpop.f32.mrb[0].mxu0
    %1220 = vmatprep.mubr.bf16.mxu0 %v998
    %1221 = vmatmul.mubr.bf16.gmra.mrb[0].mxu0 %v997
    %v1222 = vpop.f32.mrb[0].mxu0
    %v1223 = vadd.f32 %v1058, %v1222
    %v1224 = vpop.f32.mrb[0].mxu0
    %v1225 = vpop.f32.mrb[0].mxu0
    %v1226 = vadd.f32 %v1058, %v1225
    %v1227 = vpop.f32.mrb[0].mxu0
    %1228 = vmatprep.mubr.bf16.mxu0 %v1000
    %1229 = vmatmul.mubr.bf16.gmra.mrb[0].mxu0 %v999
    %v1230 = vpop.f32.mrb[0].mxu0
    %v1231 = vadd.f32 %v1058, %v1230
    %v1232 = vpop.f32.mrb[0].mxu0
    %v1233 = vpop.f32.mrb[0].mxu0
    %v1234 = vadd.f32 %v1058, %v1233
    %v1235 = vpop.f32.mrb[0].mxu0
    %1236 = vmatprep.mubr.bf16.mxu0 %v1002
    %1237 = vmatmul.mubr.bf16.gmra.mrb[0].mxu0 %v1001
    %v1238 = vpop.f32.mrb[0].mxu0
    %v1239 = vadd.f32 %v1058, %v1238
    %v1240 = vpop.f32.mrb[0].mxu0
    %v1241 = vpop.f32.mrb[0].mxu0
    %v1242 = vadd.f32 %v1058, %v1241
    %v1243 = vpop.f32.mrb[0].mxu0
    %1244 = vmatprep.mubr.bf16.mxu0 %v1004
    %1245 = vmatmul.mubr.bf16.gmra.mrb[0].mxu0 %v1003
    %v1246 = vpop.f32.mrb[0].mxu0
    %v1247 = vadd.f32 %v1058, %v1246
    %v1248 = vpop.f32.mrb[0].mxu0
    %v1249 = vpop.f32.mrb[0].mxu0
    %v1250 = vadd.f32 %v1058, %v1249
    %v1251 = vpop.f32.mrb[0].mxu0
    %1252 = vmatprep.mubr.bf16.mxu0 %v1006
    %1253 = vmatmul.mubr.bf16.gmra.mrb[0].mxu0 %v1005
    %v1254 = vpop.f32.mrb[0].mxu0
    %v1255 = vadd.f32 %v1058, %v1254
    %v1256 = vpop.f32.mrb[0].mxu0
    %v1257 = vpop.f32.mrb[0].mxu0
    %v1258 = vadd.f32 %v1058, %v1257
    %v1259 = vpop.f32.mrb[0].mxu0
    %1260 = vmatprep.mubr.bf16.mxu0 %v1008
    %1261 = vmatmul.mubr.bf16.gmra.mrb[0].mxu0 %v1007
    %v1262 = vpop.f32.mrb[0].mxu0
    %v1263 = vadd.f32 %v1058, %v1262
    %v1264 = vpop.f32.mrb[0].mxu0
    %v1265 = vpop.f32.mrb[0].mxu0
    %v1266 = vadd.f32 %v1058, %v1265
    %v1267 = vpop.f32.mrb[0].mxu0
    %1268 = vmatprep.mubr.bf16.mxu0 %v1010
    %1269 = vmatmul.mubr.bf16.gmra.mrb[0].mxu0 %v1009
    %v1270 = vpop.f32.mrb[0].mxu0
    %v1271 = vadd.f32 %v1058, %v1270
    %v1272 = vpop.f32.mrb[0].mxu0
    %v1273 = vpop.f32.mrb[0].mxu0
    %v1274 = vadd.f32 %v1058, %v1273
    %v1275 = vpop.f32.mrb[0].mxu0
    %1276 = vmatprep.mubr.bf16.mxu0 %v1012
    %1277 = vmatmul.mubr.bf16.gmra.mrb[0].mxu0 %v1011
    %v1278 = vpop.f32.mrb[0].mxu0
    %v1279 = vadd.f32 %v1058, %v1278
    %v1280 = vpop.f32.mrb[0].mxu0
    %v1281 = vpop.f32.mrb[0].mxu0
    %v1282 = vadd.f32 %v1058, %v1281
    %v1283 = vpop.f32.mrb[0].mxu0
    %1284 = vmatprep.mubr.bf16.mxu0 %v1014
    %1285 = vmatmul.mubr.bf16.gmra.mrb[0].mxu0 %v1013
    %v1286 = vpop.f32.mrb[0].mxu0
    %v1287 = vadd.f32 %v1058, %v1286
    %v1288 = vpop.f32.mrb[0].mxu0
    %v1289 = vpop.f32.mrb[0].mxu0
    %v1290 = vadd.f32 %v1058, %v1289
    %v1291 = vpop.f32.mrb[0].mxu0
    %1292 = vmatprep.mubr.bf16.mxu0 %v1016
    %1293 = vmatmul.mubr.bf16.gmra.mrb[0].mxu0 %v1015
    %v1294 = vpop.f32.mrb[0].mxu0
    %v1295 = vadd.f32 %v1058, %v1294
    %v1296 = vpop.f32.mrb[0].mxu0
    %v1297 = vpop.f32.mrb[0].mxu0
    %v1298 = vadd.f32 %v1058, %v1297
    %v1299 = vpop.f32.mrb[0].mxu0
    %1300 = vmatprep.mubr.bf16.mxu0 %v1018
    %1301 = vmatmul.mubr.bf16.gmra.mrb[0].mxu0 %v1017
    %v1302 = vpop.f32.mrb[0].mxu0
    %v1303 = vadd.f32 %v1058, %v1302
    %v1304 = vpop.f32.mrb[0].mxu0
    %v1305 = vpop.f32.mrb[0].mxu0
    %v1306 = vadd.f32 %v1058, %v1305
    %v1307 = vpop.f32.mrb[0].mxu0
    %1308 = vmatprep.mubr.bf16.mxu0 %v1020
    %1309 = vmatmul.mubr.bf16.gmra.mrb[0].mxu0 %v1019
    %v1310 = vpop.f32.mrb[0].mxu0
    %v1311 = vadd.f32 %v1058, %v1310
    %v1312 = vpop.f32.mrb[0].mxu0
    %v1313 = vpop.f32.mrb[0].mxu0
    %v1314 = vadd.f32 %v1058, %v1313
    %v1315 = vpop.f32.mrb[0].mxu0
    %1316 = vdwg.mxu0
    %1317 = vst [vmem:[#allocation5] sm:$0xff] %v1191
    %1318 = vst [vmem:[#allocation5 + $0x8] sm:$0xff] %v1194
    %1319 = vst [vmem:[#allocation5 + $0x10] sm:$0xff] %v1199
    %1320 = vst [vmem:[#allocation5 + $0x18] sm:$0xff] %v1202
    %1321 = vst [vmem:[#allocation5 + $0x20] sm:$0xff] %v1207
    %1322 = vst [vmem:[#allocation5 + $0x28] sm:$0xff] %v1210
    %1323 = vst [vmem:[#allocation5 + $0x30] sm:$0xff] %v1215
    %1324 = vst [vmem:[#allocation5 + $0x38] sm:$0xff] %v1218
    %1325 = vst [vmem:[#allocation5 + $0x40] sm:$0xff] %v1223
    %1326 = vst [vmem:[#allocation5 + $0x48] sm:$0xff] %v1226
    %1327 = vst [vmem:[#allocation5 + $0x50] sm:$0xff] %v1231
    %1328 = vst [vmem:[#allocation5 + $0x58] sm:$0xff] %v1234
    %1329 = vst [vmem:[#allocation5 + $0x60] sm:$0xff] %v1239
    %1330 = vst [vmem:[#allocation5 + $0x68] sm:$0xff] %v1242
    %1331 = vst [vmem:[#allocation5 + $0x70] sm:$0xff] %v1247
    %1332 = vst [vmem:[#allocation5 + $0x78] sm:$0xff] %v1250
    %1333 = vst [vmem:[#allocation5 + $0x80] sm:$0xff] %v1255
    %1334 = vst [vmem:[#allocation5 + $0x88] sm:$0xff] %v1258
    %1335 = vst [vmem:[#allocation5 + $0x90] sm:$0xff] %v1263
    %1336 = vst [vmem:[#allocation5 + $0x98] sm:$0xff] %v1266
    %1337 = vst [vmem:[#allocation5 + $0xa0] sm:$0xff] %v1271
    %1338 = vst [vmem:[#allocation5 + $0xa8] sm:$0xff] %v1274
    %1339 = vst [vmem:[#allocation5 + $0xb0] sm:$0xff] %v1279
    %1340 = vst [vmem:[#allocation5 + $0xb8] sm:$0xff] %v1282
    %1341 = vst [vmem:[#allocation5 + $0xc0] sm:$0xff] %v1287
    %1342 = vst [vmem:[#allocation5 + $0xc8] sm:$0xff] %v1290
    %1343 = vst [vmem:[#allocation5 + $0xd0] sm:$0xff] %v1295
    %1344 = vst [vmem:[#allocation5 + $0xd8] sm:$0xff] %v1298
    %1345 = vst [vmem:[#allocation5 + $0xe0] sm:$0xff] %v1303
    %1346 = vst [vmem:[#allocation5 + $0xe8] sm:$0xff] %v1306
    %1347 = vst [vmem:[#allocation5 + $0xf0] sm:$0xff] %v1311
    %1348 = vst [vmem:[#allocation5 + $0xf8] sm:$0xff] %v1314
    // Predicated region
    $region34: #{tpu_custom_call.1} parent=1 // pred_check
      _
    $region35: #{tpu_custom_call.1} parent=1 // pred_check_branch
      %1350 = sbr.rel (0) target = $region37
    $region36: #{tpu_custom_call.1} parent=1 // pred_region
      %s1352 = ssub.s32 4096, 4096
      %1353 = vsyncadd [#allocation4], %s1352
      %s1354 = sshll.u32 [#allocation5], 4
      %s1355 = int_to_ptr.vmem [resolvable:$true] %s1354
      %1360 = dma.vmem_to_hbm [thread:$0]  %s1355, 4096, %s7, [#allocation4], 128, 128, 8
    $region37: #{tpu_custom_call.1} parent=1 // pred_fallthru
      _
    // Predicated region
    $region38: #{tpu_custom_call.1} parent=1 // pred_check
      _
    $region39: #{tpu_custom_call.1} parent=1 // pred_check_branch
      %1362 = sbr.rel (0) target = $region41
    $region40: #{tpu_custom_call.1} parent=1 // pred_region
      %1363 = dma.done [#allocation4], 4096
    $region41: #{tpu_custom_call.1} parent=1 // pred_fallthru
      _
    %1364 = vsyncpa [#allocation3], 1
    %1365 = vsyncpa [#allocation4], 1

</llo_original>
